<compile_context>
chip_gen: v5e
topology: v5e:2x2
jax: 0.10.0
libtpu: 0.0.40
codegen_flags: <defaults>
</compile_context>

<pallas_src>
import jax
import jax.numpy as jnp
from jax.experimental import pallas as pl
from jax.experimental.pallas import tpu as pltpu

_MIB = 1024 * 1024


def _round_up(x, m):
    return ((x + m - 1) // m) * m


# ---------------------------------------------------------------------------
# Kernels.  Weight arrives pre-transposed as (K, N).
# ---------------------------------------------------------------------------
def _linear_kernel_single_k(x_ref, w_ref, b_ref, o_ref):
    """K fits in a single tile: one MXU pass, f32 bias add, single cast."""
    o_ref[...] = (
        jnp.dot(x_ref[...], w_ref[...], preferred_element_type=jnp.float32)
        + b_ref[...]
    ).astype(o_ref.dtype)


def _linear_kernel_multi_k_f32out(x_ref, w_ref, b_ref, o_ref):
    """K reduction, float32 output: accumulate directly into the resident
    output block (saves the tm*tn*4-byte scratch and the final copy)."""

    @pl.when(pl.program_id(2) == 0)
    def _():
        o_ref[...] = jnp.broadcast_to(b_ref[...], o_ref.shape)

    o_ref[...] += jnp.dot(x_ref[...], w_ref[...],
                          preferred_element_type=jnp.float32)


def _linear_kernel_multi_k_acc(x_ref, w_ref, b_ref, o_ref, acc_ref):
    """K reduction, non-f32 output: f32 scratch accumulator, cast at the end."""
    k = pl.program_id(2)

    @pl.when(k == 0)
    def _():
        acc_ref[...] = jnp.broadcast_to(b_ref[...], acc_ref.shape)

    acc_ref[...] += jnp.dot(x_ref[...], w_ref[...],
                            preferred_element_type=jnp.float32)

    @pl.when(k == pl.num_programs(2) - 1)
    def _():
        o_ref[...] = acc_ref[...].astype(o_ref.dtype)


# ---------------------------------------------------------------------------
# Generation-aware capacities / tile defaults.
# ---------------------------------------------------------------------------
def _chip_caps():
    """Return (vmem_capacity, lane_granule, (tm, tn, tk) defaults, budget, limit_cap)."""
    kind = ""
    try:
        kind = (jax.devices()[0].device_kind or "").lower()
    except Exception:
        pass

    vmem_cap = None
    try:
        info = pltpu.get_tpu_info()
        for attr in ("vmem_capacity_bytes", "vmem_bytes", "vmem_size_bytes"):
            v = getattr(info, attr, None)
            if v:
                vmem_cap = int(v)
                break
    except Exception:
        vmem_cap = None
    if vmem_cap is None:
        if "v2" in kind or "v3" in kind:
            vmem_cap = 16 * _MIB
        elif any(g in kind for g in ("v4", "v5", "v6", "trillium")):
            vmem_cap = 128 * _MIB
        else:
            vmem_cap = 64 * _MIB  # v7x has 64 MiB per TensorCore; safe default.

    old_gen = any(g in kind for g in ("v2", "v3", "v4", "v5"))
    lane_gran = 128 if old_gen else 256  # v6e/v7x MXU tiles are 2x256x256.

    if vmem_cap >= 100 * _MIB:
        # v5e / v6e class: large resident output tiles to lift arithmetic intensity.
        tiles, budget, limit_cap = (1024, 1024, 512), 56 * _MIB, 100 * _MIB
    else:
        # v7x class (64 MiB / TC) or unknown: 512x512 bf16 is already near the
        # 3.2 TB/s roofline; keep the working set small.
        tiles, budget, limit_cap = (512, 512, 512), 26 * _MIB, 48 * _MIB
    budget = min(budget, int(vmem_cap * 0.45))
    limit_cap = min(limit_cap, int(vmem_cap * 0.75))
    return vmem_cap, lane_gran, tiles, budget, limit_cap


# ---------------------------------------------------------------------------
# Wrapper.
# ---------------------------------------------------------------------------
def pallas_linear(x, weight, bias=None, *, tm=None, tn=None, tk=None,
                  compute_dtype=jnp.bfloat16, vmem_budget_bytes=None):
    """F.linear(x, weight, bias) = x @ weight.T + bias as a Pallas TPU kernel.

    weight uses the PyTorch (N, K) layout and is transposed/cast once in the
    wrapper to (K, N).  compute_dtype defaults to bfloat16 (f32 accumulation);
    pass compute_dtype=None to keep the matmul in the input dtype, or e.g.
    jnp.float8_e4m3fn on v7x for weight-bandwidth-bound inference layers.
    """
    orig_shape = x.shape
    K = orig_shape[-1]
    N, Kw = weight.shape
    assert Kw == K, f"weight shape {weight.shape} does not match input K={K}"
    out_dtype = x.dtype
    if bias is None:
        bias = jnp.zeros((N,), jnp.float32)

    cdt = jnp.dtype(compute_dtype) if compute_dtype is not None else jnp.dtype(x.dtype)

    x2 = x.reshape(-1, K)
    M = x2.shape[0]
    if x2.dtype != cdt:
        x2 = x2.astype(cdt)
    # One-time (K, N) layout + cast.
    # TODO(synk): for static weights, hoist this transpose/cast out of the
    # per-call path (store the weight as (K, N) in the compute dtype).
    w_t = weight.T
    if w_t.dtype != cdt:
        w_t = w_t.astype(cdt)
    b2 = bias.astype(jnp.float32).reshape(1, N)

    in_bytes = cdt.itemsize
    out_bytes = jnp.dtype(out_dtype).itemsize

    _, lane_gran, (tm_d, tn_d, tk_d), budget_d, limit_cap = _chip_caps()
    if vmem_budget_bytes is None:
        vmem_budget_bytes = budget_d
    tm = tm_d if tm is None else max(8, (int(tm) // 8) * 8)
    tn = tn_d if tn is None else max(128, (int(tn) // 128) * 128)
    tk = tk_d if tk is None else max(128, (int(tk) // 128) * 128)

    # Dims smaller than one aligned tile get a tiny pad; everything else relies
    # on Pallas' masked partial edge blocks (no activation/weight copies).
    Mp = M if M >= 8 else 8
    Np = N if N >= 128 else 128
    if Mp != M:
        x2 = jnp.pad(x2, ((0, Mp - M), (0, 0)))
    if Np != N:
        w_t = jnp.pad(w_t, ((0, 0), (0, Np - N)))
        b2 = jnp.pad(b2, ((0, 0), (0, Np - N)))

    # Clamp tiles so no block is larger than the (8,128)-aligned floor of a dim.
    tm = min(tm, max(8, (Mp // 8) * 8))
    tn = min(tn, max(128, (Np // 128) * 128))
    tk = min(tk, _round_up(K, 128))

    # v7x shards the "parallel" grid axes across its 2 TensorCores: make sure a
    # small problem still yields >= 2 independent (i, j) blocks.
    if pl.cdiv(Mp, tm) * pl.cdiv(Np, tn) < 2:
        if Mp > 8:
            tm = max(8, _round_up(-(-Mp // 2), 8))
        elif Np > 128:
            tn = max(128, _round_up(-(-Np // 2), 128))

    def vmem_est(tm_, tn_, tk_):
        est = 2 * (tm_ * tk_ + tk_ * tn_) * in_bytes  # double-buffered x + w
        est += 2 * tm_ * tn_ * out_bytes              # output block
        if out_dtype != jnp.float32:
            est += tm_ * tn_ * 4                      # f32 scratch accumulator
        est += 2 * tn_ * 4                            # bias tile
        return est

    def _halve_lane(v):
        nv = max(128, ((v // 2) // 128) * 128)
        if lane_gran > 128 and nv > lane_gran:
            nv = (nv // lane_gran) * lane_gran        # keep 256-alignment on v6e/v7x
        return nv

    # Shrink tk first, then whichever of tm/tn is larger (arithmetic intensity
    # tracks the harmonic mean of tm and tn).
    while vmem_est(tm, tn, tk) > vmem_budget_bytes:
        if tk > 128:
            tk = _halve_lane(tk)
        elif tn >= tm and tn > 128:
            tn = _halve_lane(tn)
        elif tm > 8:
            tm = max(8, ((tm // 2) // 8) * 8)
        elif tn > 128:
            tn = _halve_lane(tn)
        else:
            break

    # K must be covered exactly: prefer a 128-aligned tk that divides K
    # (no copies); otherwise zero-pad K only (exact for the matmul).
    Kp = K
    if K % tk != 0:
        d = (tk // 128) * 128
        while d >= 128 and K % d != 0:
            d -= 128
        if d >= 128:
            tk = d
        else:
            Kp = _round_up(K, tk)
    if Kp != K:
        x2 = jnp.pad(x2, ((0, 0), (0, Kp - K)))
        w_t = jnp.pad(w_t, ((0, Kp - K), (0, 0)))

    k_steps = Kp // tk
    grid_m, grid_n = pl.cdiv(Mp, tm), pl.cdiv(Np, tn)

    cost = pl.CostEstimate(
        flops=2 * M * N * K,
        transcendentals=0,
        bytes_accessed=(M * K * in_bytes + K * N * in_bytes + N * 4
                        + M * N * out_bytes),
    )
    est = vmem_est(tm, tn, tk)
    vmem_limit = int(min(limit_cap, max(32 * _MIB, 2 * est + 4 * _MIB)))
    semantics = (("parallel", "parallel", "arbitrary") if k_steps > 1
                 else ("parallel", "parallel"))
    compiler_params = pltpu.CompilerParams(
        dimension_semantics=semantics, vmem_limit_bytes=vmem_limit)

    if k_steps > 1:
        # Deeper input buffering hides per-step overhead when K chunks are
        # small and numerous (never triggered for the tiny demo shapes).
        deep = (k_steps >= 4) and (tk <= 256)
        if deep:
            x_spec = pl.BlockSpec((tm, tk), lambda i, j, k: (i, k),
                                  pipeline_mode=pl.Buffered(3))
            w_spec = pl.BlockSpec((tk, tn), lambda i, j, k: (k, j),
                                  pipeline_mode=pl.Buffered(3))
        else:
            x_spec = pl.BlockSpec((tm, tk), lambda i, j, k: (i, k))
            w_spec = pl.BlockSpec((tk, tn), lambda i, j, k: (k, j))
        b_spec = pl.BlockSpec((1, tn), lambda i, j, k: (0, j))
        out_spec = pl.BlockSpec((tm, tn), lambda i, j, k: (i, j))
        if out_dtype == jnp.float32:
            kernel = _linear_kernel_multi_k_f32out
            scratch = []
        else:
            kernel = _linear_kernel_multi_k_acc
            scratch = [pltpu.VMEM((tm, tn), jnp.float32)]
        grid_spec = pltpu.PrefetchScalarGridSpec(
            num_scalar_prefetch=0,
            grid=(grid_m, grid_n, k_steps),
            in_specs=[x_spec, w_spec, b_spec],
            out_specs=out_spec,
            scratch_shapes=scratch,
        )
    else:
        kernel = _linear_kernel_single_k
        grid_spec = pltpu.PrefetchScalarGridSpec(
            num_scalar_prefetch=0,
            grid=(grid_m, grid_n),
            in_specs=[
                pl.BlockSpec((tm, tk), lambda i, j: (i, 0)),
                pl.BlockSpec((tk, tn), lambda i, j: (0, j)),
                pl.BlockSpec((1, tn), lambda i, j: (0, j)),
            ],
            out_specs=pl.BlockSpec((tm, tn), lambda i, j: (i, j)),
        )

    out = pl.pallas_call(
        kernel,
        out_shape=jax.ShapeDtypeStruct((Mp, Np), out_dtype),
        grid_spec=grid_spec,
        compiler_params=compiler_params,
        cost_estimate=cost,
    )(x2, w_t, b2)

    if (Mp, Np) != (M, N):
        out = out[:M, :N]
    return out.reshape(*orig_shape[:-1], N)


if __name__ == "__main__":
    key = jax.random.PRNGKey(0)
    keys = jax.random.split(key, 12)

    # --- Test 1: nn.Linear-like shapes, default bf16 compute, single-K path,
    #     small-N padding + 2-way M split for dual-core balance -------------
    batch, seq, in_features, out_features = 2, 8, 32, 16
    x1 = jax.random.normal(keys[0], (batch, seq, in_features), dtype=jnp.float32)
    bound = 1.0 / (in_features ** 0.5)
    w1 = jax.random.uniform(keys[1], (out_features, in_features),
                            minval=-bound, maxval=bound, dtype=jnp.float32)
    b1 = jax.random.uniform(keys[2], (out_features,),
                            minval=-bound, maxval=bound, dtype=jnp.float32)
    out1 = jax.block_until_ready(pallas_linear(x1, w1, b1))
    ref1 = jnp.einsum("bsk,nk->bsn", x1, w1) + b1
    assert out1.shape == (batch, seq, out_features)
    assert out1.dtype == x1.dtype
    assert jnp.allclose(out1, ref1, atol=3e-2, rtol=3e-2), \
        float(jnp.max(jnp.abs(out1 - ref1)))

    # --- Test 2: fully unaligned M/N/K, exact f32 compute, masked edge blocks
    M2, K2, N2 = 10, 300, 200
    x2 = jax.random.normal(keys[3], (M2, K2), dtype=jnp.float32)
    w2 = jax.random.normal(keys[4], (N2, K2), dtype=jnp.float32) * 0.05
    b2 = jax.random.normal(keys[5], (N2,), dtype=jnp.float32)
    out2 = jax.block_until_ready(pallas_linear(x2, w2, b2, compute_dtype=None))
    ref2 = x2 @ w2.T + b2
    assert out2.shape == (M2, N2)
    assert jnp.allclose(out2, ref2, atol=2e-2, rtol=2e-2), \
        float(jnp.max(jnp.abs(out2 - ref2)))

    # --- Test 3: multi-K reduction with direct f32-output accumulation ------
    M3, K3, N3 = 64, 1024, 256
    x3 = jax.random.normal(keys[6], (M3, K3), dtype=jnp.float32)
    w3 = jax.random.normal(keys[7], (N3, K3), dtype=jnp.float32) * 0.03
    b3 = jax.random.normal(keys[8], (N3,), dtype=jnp.float32) * 0.1
    out3 = jax.block_until_ready(
        pallas_linear(x3, w3, b3, compute_dtype=None, tm=32, tn=128, tk=512))
    ref3 = x3 @ w3.T + b3
    assert out3.shape == (M3, N3)
    assert jnp.allclose(out3, ref3, atol=2e-2, rtol=2e-2), \
        float(jnp.max(jnp.abs(out3 - ref3)))

    # --- Test 4: bf16 in / bf16 out, multi-K with f32 scratch accumulator ---
    M4, K4, N4 = 16, 256, 128
    x4 = jax.random.normal(keys[9], (M4, K4), dtype=jnp.float32).astype(jnp.bfloat16)
    w4 = (jax.random.normal(keys[10], (N4, K4), dtype=jnp.float32) * 0.06
          ).astype(jnp.bfloat16)
    b4 = (jax.random.normal(keys[11], (N4,), dtype=jnp.float32) * 0.1
          ).astype(jnp.bfloat16)
    out4 = jax.block_until_ready(pallas_linear(x4, w4, b4, tm=8, tn=128, tk=128))
    ref4 = x4.astype(jnp.float32) @ w4.astype(jnp.float32).T + b4.astype(jnp.float32)
    assert out4.dtype == jnp.bfloat16
    assert jnp.allclose(out4.astype(jnp.float32), ref4, atol=6e-2, rtol=6e-2), \
        float(jnp.max(jnp.abs(out4.astype(jnp.float32) - ref4)))

    print("KERNEL_OK")
</pallas_src>

<mosaic_0001>
module attributes {stable_mosaic.version = 11 : i64} {
  func.func @_linear_kernel_single_k(%arg0: i32, %arg1: i32, %arg2: memref<8x128xbf16, #tpu.memory_space<vmem>>, %arg3: memref<128x128xbf16, #tpu.memory_space<vmem>>, %arg4: memref<1x128xf32, #tpu.memory_space<vmem>>, %arg5: memref<8x128xf32, #tpu.memory_space<vmem>>) attributes {dimension_semantics = [#tpu.dimension_semantics<parallel>, #tpu.dimension_semantics<parallel>], iteration_bounds = array<i64: 2, 1>, scalar_prefetch = 0 : i64, scratch_operands = 0 : i64, tpu.core_type = #tpu.core_type<tc>, window_params = [{transform_indices = @transform_0, window_bounds = array<i64: 8, 128>}, {transform_indices = @transform_1, window_bounds = array<i64: 128, 128>}, {transform_indices = @transform_2, window_bounds = array<i64: 1, 128>}, {transform_indices = @transform_3, window_bounds = array<i64: 8, 128>}]} {
    %c0 = arith.constant 0 : index
    %c0_0 = arith.constant 0 : index
    %0 = vector.load %arg2[%c0, %c0_0] : memref<8x128xbf16, #tpu.memory_space<vmem>>, vector<8x128xbf16>
    %c0_1 = arith.constant 0 : index
    %c0_2 = arith.constant 0 : index
    %1 = vector.load %arg3[%c0_1, %c0_2] : memref<128x128xbf16, #tpu.memory_space<vmem>>, vector<128x128xbf16>
    %cst = arith.constant dense<0.000000e+00> : vector<8x128xf32>
    %2 = tpu.matmul %0, %1, %cst {dimension_numbers = #tpu.dot_dimension_numbers<[1], [0], [0], [1], [0, 0, 1, 1], [], []>} : vector<8x128xbf16>, vector<128x128xbf16>, vector<8x128xf32> -> vector<8x128xf32>
    %c0_3 = arith.constant 0 : index
    %c0_4 = arith.constant 0 : index
    %3 = vector.load %arg4[%c0_3, %c0_4] : memref<1x128xf32, #tpu.memory_space<vmem>>, vector<1x128xf32>
    %4 = vector.broadcast %3 : vector<1x128xf32> to vector<8x128xf32>
    %5 = arith.addf %2, %4 : vector<8x128xf32>
    %c0_5 = arith.constant 0 : index
    %c0_6 = arith.constant 0 : index
    %6 = vector.load %arg5[%c0_5, %c0_6] : memref<8x128xf32, #tpu.memory_space<vmem>>, vector<8x128xf32>
    tpu.vector_store %arg5[%c0_5, %c0_6], %5 {strides = array<i32>} : memref<8x128xf32, #tpu.memory_space<vmem>>, vector<8x128xf32>,
    return
  }
  func.func @transform_0(%arg0: i32, %arg1: i32) -> (i32, i32) {
    %c0_i32 = arith.constant 0 : i32
    %c0_i32_0 = arith.constant 0 : i32
    return %arg0, %c0_i32 : i32, i32
  }
  func.func @transform_1(%arg0: i32, %arg1: i32) -> (i32, i32) {
    %c0_i32 = arith.constant 0 : i32
    %c0_i32_0 = arith.constant 0 : i32
    return %c0_i32, %arg1 : i32, i32
  }
  func.func @transform_2(%arg0: i32, %arg1: i32) -> (i32, i32) {
    %c0_i32 = arith.constant 0 : i32
    %c0_i32_0 = arith.constant 0 : i32
    return %c0_i32, %arg1 : i32, i32
  }
  func.func @transform_3(%arg0: i32, %arg1: i32) -> (i32, i32) {
    %c0_i32 = arith.constant 0 : i32
    return %arg0, %arg1 : i32, i32
  }
}

</mosaic_0001>

<llo_original>
// kernel: tpu_custom_call.1
$region0: #{tpu_custom_call.1}
  #allocation0 [shape = 'u32[]', space=smem, size = 0x4, offset = 0x4, fixed_abs, tag = 'smem constant byte address 0x4 - core index']
  #allocation1 [shape = 'u32[72,128]{1,0:T(1,128)}', space=vmem, size = 0x9000, scoped, tag = 'internal scratch']
  %s0 = inlined_call_operand.hbm [shape: bf16[16,128], index: 0, kind: input, shape index: {}]
  %s1 = inlined_call_operand.hbm [shape: bf16[128,128], index: 1, kind: input, shape index: {}]
  %s2 = inlined_call_operand.vmem [shape: f32[1,128], index: 2, kind: input, shape index: {}]
  %s3 = inlined_call_operand.hbm [shape: f32[16,128], index: 3, kind: output, shape index: {}]
  %s4 = sld [smem:[#allocation0]]
  $region53: #{tpu_custom_call.1} parent=0
    _
  %s6 = ssub.s32 1, %s4
  %s7 = scalar_select 0, %s6, %s4
  $region1: #{tpu_custom_call.1} parent=0
    #allocation2 [shape = 'u8[4096]{0}', space=vmem, size = 0x1000, scoped, tag = 'input window, operand 0']
    #allocation3 [shape = 's32[2]{0}', space=sflag, size = 0x8, scoped, tag = 'scoped memory for tpu_custom_call.1']
    #allocation4 [shape = 's32[2]{0}', space=sflag, size = 0x8, scoped, tag = 'scoped memory for tpu_custom_call.1']
    #allocation5 [shape = 'u8[32768]{0}', space=vmem, size = 0x8000, scoped, tag = 'input window, operand 1, single buffered']
    #allocation6 [shape = 's32[1]{0}', space=sflag, size = 0x4, scoped, tag = 'scoped memory for tpu_custom_call.1']
    #allocation7 [shape = 'u8[8192]{0}', space=vmem, size = 0x2000, scoped, tag = 'output window, operand 0']
    %8 = vsyncpa [#allocation3], 0
    %s9 = scalar_lea.sflag [#allocation3], 1
    %10 = vsyncpa %s9, 0
    %11 = vsyncpa [#allocation6], 0
    %12 = vsyncpa [#allocation4], 0
    %s13 = scalar_lea.sflag [#allocation4], 1
    %14 = vsyncpa %s13, 0
    loop: start=0, step=1, limit=4
    $region2: #{tpu_custom_call.1} parent=1 // loop_pre_header
      _
    $region3: #{tpu_custom_call.1} parent=1 // loop_header
      %s16 = sphi 0, %s20
      %p17 = scmp.ge.s32.totalorder %s16, 4
      %s23 = sphi 0, %s35
      %s24 = sphi 0, %s31
      %s25 = sphi 0, %s23
      %s26 = sphi 0, %s24
      %s27 = sphi 0, %s25
      %s28 = sphi 0, %s26
      %s38 = sphi 0, %s40
      %s41 = sphi 0, %s38
      %s42 = sphi 0, %s41
      %s58 = sphi 0, %s42
      %s64 = sphi 0, %s66
      %s67 = sphi 0, %s64
      %s68 = sphi 0, %s67
      %s84 = sphi 0, %s68
      %s90 = sphi 0, %s92
      %s93 = sphi 0, %s90
      %s94 = sphi 0, %s93
      %s110 = sphi 0, %s94
      %s118 = sphi 0, %s120
      %s121 = sphi 0, %s118
      %s122 = sphi 0, %s121
      %s138 = sphi 0, %s122
    $region4: #{tpu_custom_call.1} parent=1 // loop_header_branch
      %19 = sbr.rel (%p17) target = $region8
    $region5: #{tpu_custom_call.1} parent=1 // loop_body
      %s21 = ssub.s32 %s16, 1
      %s22 = ssub.s32 %s16, 2
      %s29 = sadd.s32 1, %s24
      %p30 = scmp.ge.s32.totalorder %s29, 1
      %s31 = scalar_select %p30, 0, %s29
      %s32 = sadd.s32 1, %s23
      %s33 = scalar_select %p30, %s32, %s23
      %p34 = scmp.ge.s32.totalorder %s33, 2
      %s35 = scalar_select %p34, 0, %s33
      %s36 = ssub.s32 %s23, %s35
      %p37 = scmp.eq.s32.totalorder %s36, 0
      %s39 = sadd.s32 %s38, 1
      %s40 = scalar_select %p37, %s38, %s39
      %p43 = pneg %p37
      %p44 = scmp.eq.s32.totalorder %s16, 1
      %p45 = por %p43, %p44
      %p46 = scmp.ne.s32.totalorder %s38, %s41
      %p47 = scmp.eq.s32.totalorder %s16, 0
      %p48 = por %p46, %p47
      %p49 = scmp.ne.s32.totalorder %s38, %s41
      %p50 = scmp.eq.s32.totalorder %s21, 1
      %p51 = por %p49, %p50
      %p52 = scmp.ne.s32.totalorder %s41, %s42
      %p53 = scmp.eq.s32.totalorder %s21, 0
      %p54 = por %p52, %p53
      %p55 = scmp.ne.s32.totalorder %s41, %s42
      %p56 = scmp.eq.s32.totalorder %s22, 1
      %p57 = por %p55, %p56
      %p59 = scmp.ne.s32.totalorder %s42, %s58
      %p60 = scmp.eq.s32.totalorder %s22, 0
      %p61 = por %p59, %p60
      %s62 = ssub.s32 %s24, %s31
      %p63 = scmp.eq.s32.totalorder %s62, 0
      %s65 = sadd.s32 %s64, 1
      %s66 = scalar_select %p63, %s64, %s65
      %p69 = pneg %p63
      %p70 = scmp.eq.s32.totalorder %s16, 1
      %p71 = por %p69, %p70
      %p72 = scmp.ne.s32.totalorder %s64, %s67
      %p73 = scmp.eq.s32.totalorder %s16, 0
      %p74 = por %p72, %p73
      %p75 = scmp.ne.s32.totalorder %s64, %s67
      %p76 = scmp.eq.s32.totalorder %s21, 1
      %p77 = por %p75, %p76
      %p78 = scmp.ne.s32.totalorder %s67, %s68
      %p79 = scmp.eq.s32.totalorder %s21, 0
      %p80 = por %p78, %p79
      %p81 = scmp.ne.s32.totalorder %s67, %s68
      %p82 = scmp.eq.s32.totalorder %s22, 1
      %p83 = por %p81, %p82
      %p85 = scmp.ne.s32.totalorder %s68, %s84
      %p86 = scmp.eq.s32.totalorder %s22, 0
      %p87 = por %p85, %p86
      %s88 = ssub.s32 %s24, %s31
      %p89 = scmp.eq.s32.totalorder %s88, 0
      %s91 = sadd.s32 %s90, 1
      %s92 = scalar_select %p89, %s90, %s91
      %p95 = pneg %p89
      %p96 = scmp.eq.s32.totalorder %s16, 1
      %p97 = por %p95, %p96
      %p98 = scmp.ne.s32.totalorder %s90, %s93
      %p99 = scmp.eq.s32.totalorder %s16, 0
      %p100 = por %p98, %p99
      %p101 = scmp.ne.s32.totalorder %s90, %s93
      %p102 = scmp.eq.s32.totalorder %s21, 1
      %p103 = por %p101, %p102
      %p104 = scmp.ne.s32.totalorder %s93, %s94
      %p105 = scmp.eq.s32.totalorder %s21, 0
      %p106 = por %p104, %p105
      %p107 = scmp.ne.s32.totalorder %s93, %s94
      %p108 = scmp.eq.s32.totalorder %s22, 1
      %p109 = por %p107, %p108
      %p111 = scmp.ne.s32.totalorder %s94, %s110
      %p112 = scmp.eq.s32.totalorder %s22, 0
      %p113 = por %p111, %p112
      %s114 = ssub.s32 %s23, %s35
      %s115 = ssub.s32 %s24, %s31
      %s116 = sor.u32 %s114, %s115
      %p117 = scmp.eq.s32.totalorder %s116, 0
      %s119 = sadd.s32 %s118, 1
      %s120 = scalar_select %p117, %s118, %s119
      %p123 = pneg %p117
      %p124 = scmp.eq.s32.totalorder %s16, 1
      %p125 = por %p123, %p124
      %p126 = scmp.ne.s32.totalorder %s118, %s121
      %p127 = scmp.eq.s32.totalorder %s16, 0
      %p128 = por %p126, %p127
      %p129 = scmp.ne.s32.totalorder %s118, %s121
      %p130 = scmp.eq.s32.totalorder %s21, 1
      %p131 = por %p129, %p130
      %p132 = scmp.ne.s32.totalorder %s121, %s122
      %p133 = scmp.eq.s32.totalorder %s21, 0
      %p134 = por %p132, %p133
      %p135 = scmp.ne.s32.totalorder %s121, %s122
      %p136 = scmp.eq.s32.totalorder %s22, 1
      %p137 = por %p135, %p136
      %p139 = scmp.ne.s32.totalorder %s122, %s138
      %p140 = scmp.eq.s32.totalorder %s22, 0
      %p141 = por %p139, %p140
      %p142 = scmp.le.s32.totalorder 1, %s16
      %p143 = scmp.lt.s32.totalorder %s16, 3
      %p144 = pnand %p142, %p143
      %p145 = pneg %p144
      // Predicated region
      $region9: #{tpu_custom_call.1} parent=5 // pred_check
        _
      $region10: #{tpu_custom_call.1} parent=5 // pred_check_branch
        %147 = sbr.rel (%p144) target = $region12
      $region11: #{tpu_custom_call.1} parent=5 // pred_region
        %s148 = ssub.s32 %s16, 1
        // Predicated region
        $region13: #{tpu_custom_call.1} parent=11 // pred_check
          %p149 = pneg %p80
        $region14: #{tpu_custom_call.1} parent=11 // pred_check_branch
          %151 = sbr.rel (%p149) target = $region16
        $region15: #{tpu_custom_call.1} parent=11 // pred_region
          %153 = vsyncadd [#allocation6], 0
          %s154 = smul.addr %s26, 4
          %s155 = scalar_lea.hbm %s1, %s154
          %s156 = sshll.u32 %s155, 4
          %s157 = int_to_ptr.hbm [resolvable:$true] %s156
          %s158 = sshll.u32 [#allocation5], 4
          %s159 = int_to_ptr.vmem [resolvable:$true] %s158
          %164 = dma.hbm_to_vmem [thread:$0]  %s157, 1024, %s159, [#allocation6], 64, 64, 4
        $region16: #{tpu_custom_call.1} parent=11 // pred_fallthru
          _
        // Predicated region
        $region17: #{tpu_custom_call.1} parent=11 // pred_check
          %p165 = pneg %p106
        $region18: #{tpu_custom_call.1} parent=11 // pred_check_branch
          %167 = sbr.rel (%p165) target = $region20
        $region19: #{tpu_custom_call.1} parent=11 // pred_region
          %p168 = scmp.lt.s32.totalorder %s26, 0
          %s169 = scalar_select %p168, %s26, 0
          %s170 = scalar_lea.vmem %s2, %s169
        $region20: #{tpu_custom_call.1} parent=11 // pred_fallthru
          _
      $region12: #{tpu_custom_call.1} parent=5 // pred_fallthru
        _
      %p171 = scmp.lt.s32.totalorder %s16, 2
      // Predicated region
      $region21: #{tpu_custom_call.1} parent=5 // pred_check
        %p172 = pneg %p171
      $region22: #{tpu_custom_call.1} parent=5 // pred_check_branch
        %174 = sbr.rel (%p172) target = $region24
      $region23: #{tpu_custom_call.1} parent=5 // pred_region
        // Predicated region
        $region25: #{tpu_custom_call.1} parent=23 // pred_check
          %p175 = pneg %p48
        $region26: #{tpu_custom_call.1} parent=23 // pred_check_branch
          %177 = sbr.rel (%p175) target = $region28
        $region27: #{tpu_custom_call.1} parent=23 // pred_region
          %s178 = sand.u32 %s38, 1
          %s179 = scalar_lea.sflag [#allocation3], %s178
          %s180 = sand.u32 %s38, 1
          %s181 = smul.addr %s180, 4
          %s182 = scalar_lea.vmem [#allocation2], %s181
          %184 = vsyncadd %s179, 0
          %s185 = smul.addr %s23, 4
          %s186 = scalar_lea.hbm %s0, %s185
          %s188 = sshll.u32 %s186, 4
          %s189 = int_to_ptr.hbm [resolvable:$true] %s188
          %s190 = sshll.u32 %s182, 4
          %s191 = int_to_ptr.vmem [resolvable:$true] %s190
          %193 = dma.hbm_to_vmem [thread:$0]  %s189, 64, %s191, %s179
        $region28: #{tpu_custom_call.1} parent=23 // pred_fallthru
          _
      $region24: #{tpu_custom_call.1} parent=5 // pred_fallthru
        _
      %p194 = scmp.le.s32.totalorder 1, %s16
      %p195 = scmp.lt.s32.totalorder %s16, 3
      %p196 = pnand %p194, %p195
      %p197 = pneg %p196
      // Predicated region
      $region29: #{tpu_custom_call.1} parent=5 // pred_check
        _
      $region30: #{tpu_custom_call.1} parent=5 // pred_check_branch
        %199 = sbr.rel (%p196) target = $region32
      $region31: #{tpu_custom_call.1} parent=5 // pred_region
        %s200 = ssub.s32 %s16, 1
        %s201 = sand.u32 %s41, 1
        %s202 = scalar_lea.sflag [#allocation3], %s201
        %s203 = sand.u32 %s41, 1
        %s204 = smul.addr %s203, 4
        %s205 = scalar_lea.vmem [#allocation2], %s204
        // Predicated region
        $region33: #{tpu_custom_call.1} parent=31 // pred_check
          %p206 = pneg %p54
        $region34: #{tpu_custom_call.1} parent=31 // pred_check_branch
          %208 = sbr.rel (%p206) target = $region36
        $region35: #{tpu_custom_call.1} parent=31 // pred_region
          %210 = dma.done %s202, 64
        $region36: #{tpu_custom_call.1} parent=31 // pred_fallthru
          _
        // Predicated region
        $region37: #{tpu_custom_call.1} parent=31 // pred_check
          %p211 = pneg %p80
        $region38: #{tpu_custom_call.1} parent=31 // pred_check_branch
          %213 = sbr.rel (%p211) target = $region40
        $region39: #{tpu_custom_call.1} parent=31 // pred_region
          %215 = dma.done [#allocation6], 1024
        $region40: #{tpu_custom_call.1} parent=31 // pred_fallthru
          _
        %s216 = sand.u32 %s41, 1
        %s217 = scalar_lea.sflag [#allocation3], %s216
        %s218 = sand.u32 %s41, 1
        %s219 = smul.addr %s218, 4
        %s220 = scalar_lea.vmem [#allocation2], %s219
        %p221 = pneg %p54
        %p222 = pneg %p51
        %p223 = pneg %p80
        %p224 = pneg %p77
        %p225 = scmp.lt.s32.totalorder %s26, 0
        %s226 = scalar_select %p225, %s26, 0
        %s227 = scalar_lea.vmem %s2, %s226
        %p228 = pneg %p106
        %p229 = pneg %p103
        %p230 = pneg %p134
        %p231 = pneg %p131
        %s232 = sand.u32 %s121, 1
        %s233 = scalar_lea.sflag [#allocation4], %s232
        %s234 = sand.u32 %s121, 1
        %s235 = smul.addr %s234, 8
        %s236 = scalar_lea.vmem [#allocation7], %s235
        %p237 = scmp.lt.s32.totalorder %s26, 0
        %s238 = scalar_select %p237, %s26, 0
        %s239 = scalar_lea.vmem %s2, %s238
        %v240 = vld [vmem:[%s205] sm:$0xf]
        %v241 = vld [vmem:[#allocation5] sm:$0xf]
        %v242 = vld [vmem:[#allocation5 + $0x4] sm:$0xf]
        %v243 = vld [vmem:[#allocation5 + $0x8] sm:$0xf]
        %v244 = vld [vmem:[#allocation5 + $0xc] sm:$0xf]
        %v245 = vld [vmem:[#allocation5 + $0x10] sm:$0xf]
        %v246 = vld [vmem:[#allocation5 + $0x14] sm:$0xf]
        %v247 = vld [vmem:[#allocation5 + $0x18] sm:$0xf]
        %v248 = vld [vmem:[#allocation5 + $0x1c] sm:$0xf]
        %v249 = vld [vmem:[#allocation5 + $0x20] sm:$0xf]
        %v250 = vld [vmem:[#allocation5 + $0x24] sm:$0xf]
        %v251 = vld [vmem:[#allocation5 + $0x28] sm:$0xf]
        %v252 = vld [vmem:[#allocation5 + $0x2c] sm:$0xf]
        %v253 = vld [vmem:[#allocation5 + $0x30] sm:$0xf]
        %v254 = vld [vmem:[#allocation5 + $0x34] sm:$0xf]
        %v255 = vld [vmem:[#allocation5 + $0x38] sm:$0xf]
        %v256 = vld [vmem:[#allocation5 + $0x3c] sm:$0xf]
        %v257 = vld [vmem:[%s239] sm:$0x1]
        %v259 = vperm.slane %v257, 0
        %v277 = vunpack.c.l.b16 %v241
        %v278 = vunpack.c.l.b16 %v242
        %v279 = vunpack.c.l.b16 %v243
        %v280 = vunpack.c.l.b16 %v244
        %v281 = vunpack.c.l.b16 %v245
        %v282 = vunpack.c.l.b16 %v246
        %v283 = vunpack.c.l.b16 %v247
        %v284 = vunpack.c.l.b16 %v248
        %v285 = vunpack.c.l.b16 %v249
        %v286 = vunpack.c.l.b16 %v250
        %v287 = vunpack.c.l.b16 %v251
        %v288 = vunpack.c.l.b16 %v252
        %v289 = vunpack.c.l.b16 %v253
        %v290 = vunpack.c.l.b16 %v254
        %v291 = vunpack.c.l.b16 %v255
        %v292 = vunpack.c.l.b16 %v256
        %v293 = vpack.c.b16 %v278, %v277
        %v294 = vpack.c.b16 %v280, %v279
        %v295 = vpack.c.b16 %v282, %v281
        %v296 = vpack.c.b16 %v284, %v283
        %v297 = vpack.c.b16 %v286, %v285
        %v298 = vpack.c.b16 %v288, %v287
        %v299 = vpack.c.b16 %v290, %v289
        %v300 = vpack.c.b16 %v292, %v291
        %309 = vmatpush.bf16.msra.mxu0 %v300
        %310 = vmatpush.bf16.msra.mxu0 %v299
        %311 = vmatpush.bf16.msra.mxu0 %v298
        %312 = vmatpush.bf16.msra.mxu0 %v297
        %313 = vmatpush.bf16.msra.mxu0 %v296
        %314 = vmatpush.bf16.msra.mxu0 %v295
        %315 = vmatpush.bf16.msra.mxu0 %v294
        %316 = vmatpush.bf16.msra.mxu0 %v293
        %317 = vmatmul.bf16.gmra.mxu0 %v240
        %v318 = vpop.f32.mrf.mxu0
        %v319 = vadd.f32 %v259, %v318
        %v320 = vpop.f32.mrf.mxu0
        %321 = vdwg.mxu0
        %322 = vst [vmem:[%s236] sm:$0xff] %v319
        %s323 = sand.u32 %s121, 1
        %s324 = scalar_lea.sflag [#allocation4], %s323
        %s325 = sand.u32 %s121, 1
        %s326 = smul.addr %s325, 8
        %s327 = scalar_lea.vmem [#allocation7], %s326
        // Predicated region
        $region41: #{tpu_custom_call.1} parent=31 // pred_check
          %p328 = pneg %p131
        $region42: #{tpu_custom_call.1} parent=31 // pred_check_branch
          %330 = sbr.rel (%p328) target = $region44
        $region43: #{tpu_custom_call.1} parent=31 // pred_region
          %332 = vsyncadd %s324, 0
          %s333 = sadd.s32 %s26, %s25
          %s334 = smul.addr %s333, 8
          %s335 = scalar_lea.hbm %s3, %s334
          %s337 = sshll.u32 %s327, 4
          %s338 = int_to_ptr.vmem [resolvable:$true] %s337
          %s339 = sshll.u32 %s335, 4
          %s340 = int_to_ptr.hbm [resolvable:$true] %s339
          %342 = dma.vmem_to_hbm [thread:$0]  %s338, 128, %s340, %s324
        $region44: #{tpu_custom_call.1} parent=31 // pred_fallthru
          _
      $region32: #{tpu_custom_call.1} parent=5 // pred_fallthru
        _
      %p343 = scmp.le.s32.totalorder 2, %s16
      // Predicated region
      $region45: #{tpu_custom_call.1} parent=5 // pred_check
        %p344 = pneg %p343
      $region46: #{tpu_custom_call.1} parent=5 // pred_check_branch
        %346 = sbr.rel (%p344) target = $region48
      $region47: #{tpu_custom_call.1} parent=5 // pred_region
        %s347 = ssub.s32 %s16, 2
        // Predicated region
        $region49: #{tpu_custom_call.1} parent=47 // pred_check
          %p348 = pneg %p137
        $region50: #{tpu_custom_call.1} parent=47 // pred_check_branch
          %350 = sbr.rel (%p348) target = $region52
        $region51: #{tpu_custom_call.1} parent=47 // pred_region
          %s351 = sand.u32 %s122, 1
          %s352 = scalar_lea.sflag [#allocation4], %s351
          %s353 = sand.u32 %s122, 1
          %s354 = smul.addr %s353, 8
          %s355 = scalar_lea.vmem [#allocation7], %s354
          %357 = dma.done %s352, 128
        $region52: #{tpu_custom_call.1} parent=47 // pred_fallthru
          _
      $region48: #{tpu_custom_call.1} parent=5 // pred_fallthru
        _
    $region6: #{tpu_custom_call.1} parent=1 // loop_footer
      %s20 = sadd.s32 1, %s16
    $region7: #{tpu_custom_call.1} parent=1 // loop_footer_branch
      %15 = sbr.rel target = $region3
    $region8: #{tpu_custom_call.1} parent=1 // loop_exit
      _
    %358 = vsyncpa [#allocation3], 1
    %s359 = scalar_lea.sflag [#allocation3], 1
    %360 = vsyncpa %s359, 1
    %361 = vsyncpa [#allocation6], 1
    %362 = vsyncpa [#allocation4], 1
    %s363 = scalar_lea.sflag [#allocation4], 1
    %364 = vsyncpa %s363, 1

</llo_original>
